<compile_context>
chip_gen: v7x
topology: tpu7x:2x2x1
jax: 0.10.0
libtpu: 0.0.40
codegen_flags: <defaults>
</compile_context>

<pallas_src>
import functools

import jax
import jax.numpy as jnp
from jax import lax
from jax.experimental import pallas as pl
from jax.experimental.pallas import tpu as pltpu


# --------------------------------------------------------------------------
# Pallas kernel
# --------------------------------------------------------------------------
def _condenser_kernel(q0_ref, ql_ref,            # (TB, H), (TB, H)       query CLS first/last hidden
                      p0_ref, plast_ref,         # (TB*P, H), (TB*P, H)   passage CLS first/last hidden
                      lbl_ref,                   # (TB, 1) int32
                      *out_refs,                 # scores (TB,P), ce (TB,1) [, q_reps (TB,H), p_reps (TB*P,H)]
                      emit_reps: bool):
    scores_ref, ce_ref = out_refs[0], out_refs[1]
    tb, P = scores_ref.shape

    # reps = (hidden[0][:, 0] + hidden[-1][:, 0]) / 2   (f32 VPU math)
    q_rep = (q0_ref[...] + ql_ref[...]) * 0.5                       # (TB, H)

    if emit_reps:
        qreps_ref, preps_ref = out_refs[2], out_refs[3]
        qreps_ref[...] = q_rep.astype(qreps_ref.dtype)
        preps_ref[...] = ((p0_ref[...] + plast_ref[...]) * 0.5).astype(preps_ref.dtype)

    # Group-wise scores without ever forming a (TB, P, H) broadcast temporary:
    # for passage slot j, read rows j, j+P, j+2P, ... with a strided sublane
    # load, multiply by q_rep (VPU) and lane-reduce over H (XLU).
    cols = []
    for j in range(P):                                              # P is small & static
        p_rep_j = (p0_ref[pl.ds(j, tb, stride=P), :] +
                   plast_ref[pl.ds(j, tb, stride=P), :]) * 0.5      # (TB, H)
        cols.append(jnp.sum(q_rep * p_rep_j, axis=-1, keepdims=True))   # (TB, 1)
    s = jnp.concatenate(cols, axis=-1)                              # (TB, P) f32
    scores_ref[...] = s

    # Per-query cross-entropy: logsumexp(s) - s[label]  (row-wise lane reductions).
    m = jnp.max(s, axis=-1, keepdims=True)                          # (TB, 1)
    lse = m + jnp.log(jnp.sum(jnp.exp(s - m), axis=-1, keepdims=True))
    col = lax.broadcasted_iota(jnp.int32, s.shape, 1)               # (TB, P)
    picked = jnp.sum(jnp.where(col == lbl_ref[...], s, 0.0),
                     axis=-1, keepdims=True)                        # (TB, 1)
    # NOTE: out-of-range labels silently give picked=0 (loss = logsumexp) rather
    # than erroring like torch CrossEntropyLoss; validate labels upstream.
    ce_ref[...] = lse - picked


# --------------------------------------------------------------------------
# Tiling / VMEM sizing helpers
# --------------------------------------------------------------------------
def _lane(n):
    return ((n + 127) // 128) * 128


def _per_step_vmem_bytes(tb, P, H, rep_bytes, emit_reps):
    """Per-grid-step VMEM footprint: double-buffered blocks + compute temps."""
    f32 = 4
    lh = _lane(H)
    # double-buffered input blocks: q0/ql (TB,H), p0/plast (TB*P,H) [dense 2-D], labels (TB,1)
    in_db = 2 * f32 * (2 * tb * lh + 2 * tb * P * lh + tb * _lane(1))
    # double-buffered output blocks: scores (TB,P), ce (TB,1) [lane-padded], reps optional
    out_db = 2 * f32 * (tb * _lane(P) + tb * _lane(1))
    if emit_reps:
        out_db += 2 * rep_bytes * (tb * lh + tb * P * lh)
    # single-buffered compute temporaries: q_rep + a few (TB,H) per-slot values
    # + the full (TB*P,H) f32 p_rep value when reps are emitted.
    temps = f32 * (4 * tb * lh + (tb * P * lh if emit_reps else 0))
    return in_db + out_db + temps


def _pick_block_b(B, P, H, rep_bytes, emit_reps, budget_bytes, min_steps=8):
    """Query-tile size: multiple of 8, fits the VMEM budget, and small enough to
    give at least ~min_steps grid steps (so DMA/compute overlap and, on v7x,
    both TensorCores get work)."""
    if B <= 8:
        return B                                    # tiny batch: one full block
    per8 = _per_step_vmem_bytes(8, P, H, rep_bytes, emit_reps)
    cap = max(8, (budget_bytes * 8 // per8) // 8 * 8)          # VMEM-budget cap
    steps_cap = max(8, (B // min_steps) // 8 * 8)              # >= min_steps steps
    return int(min(cap, steps_cap))


# --------------------------------------------------------------------------
# Wrapper
# --------------------------------------------------------------------------
def condenser_ltr_head(q_h0_cls, q_hl_cls, p_h0_cls, p_hl_cls, labels,
                       rep_dtype=jnp.float32, emit_reps=True,
                       block_b=None, min_steps=8):
    """Pallas implementation of CondenserLTR.forward given encoder CLS states.

    q_h0_cls, q_hl_cls : (B, H) float32
    p_h0_cls, p_hl_cls : (B*P, H) float32
    labels             : (B,) int
    rep_dtype          : dtype of the returned q_reps/p_reps (bf16 cuts ~17% of
                         HBM traffic; f32 default preserves exact module output).
    emit_reps          : False -> skip q_reps/p_reps writeback (~33% less traffic).
    Returns (loss, scores, q_reps, p_reps)  (reps are None if emit_reps=False).
    """
    B, H = q_h0_cls.shape
    BP, Hp = p_h0_cls.shape
    assert Hp == H and BP % B == 0, "passage CLS shape must be (B*P, H)"
    P = BP // B
    rep_bytes = jnp.dtype(rep_dtype).itemsize

    # Per-generation tile budget: larger blocks on 128-MiB parts (v5e/v6e),
    # conservative on 64-MiB v7x / unknown.
    try:
        vmem_cap = int(pltpu.get_tpu_info().vmem_capacity_bytes)
    except Exception:
        vmem_cap = 64 << 20
    budget = (32 << 20) if vmem_cap >= (100 << 20) else (16 << 20)

    TB = block_b if block_b is not None else _pick_block_b(
        B, P, H, rep_bytes, emit_reps, budget, min_steps)
    assert TB == B or TB % 8 == 0, "block_b must be a multiple of 8 (or == B)"

    # Ragged batches: pad B up to a multiple of TB (padded rows are zeros and
    # are sliced off before the mean, so semantics are unchanged).
    n_steps = -(-B // TB)
    B_pad = n_steps * TB
    grid = (n_steps,)

    lbl = labels.astype(jnp.int32).reshape(B, 1)
    q0, ql, p0, plast = q_h0_cls, q_hl_cls, p_h0_cls, p_hl_cls
    if B_pad > B:
        pad_q = ((0, B_pad - B), (0, 0))
        pad_p = ((0, (B_pad - B) * P), (0, 0))
        q0 = jnp.pad(q0, pad_q)
        ql = jnp.pad(ql, pad_q)
        p0 = jnp.pad(p0, pad_p)
        plast = jnp.pad(plast, pad_p)
        lbl = jnp.pad(lbl, ((0, B_pad - B), (0, 0)))

    # Scoped-VMEM limit from the real block footprint; capped at 48 MiB so it is
    # valid with headroom on v7x's 64-MiB VMEM (and harmless on 128-MiB parts).
    footprint = _per_step_vmem_bytes(TB, P, H, rep_bytes, emit_reps)
    vmem_limit = int(min(48 << 20, max(32 << 20, footprint + (4 << 20))))

    in_specs = [
        pl.BlockSpec((TB, H), lambda i: (i, 0)),        # q hidden[0][:,0]
        pl.BlockSpec((TB, H), lambda i: (i, 0)),        # q hidden[-1][:,0]
        pl.BlockSpec((TB * P, H), lambda i: (i, 0)),    # p hidden[0][:,0]   (dense 2-D)
        pl.BlockSpec((TB * P, H), lambda i: (i, 0)),    # p hidden[-1][:,0]  (dense 2-D)
        pl.BlockSpec((TB, 1), lambda i: (i, 0)),        # labels
    ]
    out_specs = [
        pl.BlockSpec((TB, P), lambda i: (i, 0)),        # scores
        pl.BlockSpec((TB, 1), lambda i: (i, 0)),        # per-query CE
    ]
    out_shape = [
        jax.ShapeDtypeStruct((B_pad, P), jnp.float32),
        jax.ShapeDtypeStruct((B_pad, 1), jnp.float32),
    ]
    if emit_reps:
        out_specs += [
            pl.BlockSpec((TB, H), lambda i: (i, 0)),
            pl.BlockSpec((TB * P, H), lambda i: (i, 0)),
        ]
        out_shape += [
            jax.ShapeDtypeStruct((B_pad, H), rep_dtype),
            jax.ShapeDtypeStruct((B_pad * P, H), rep_dtype),
        ]

    results = pl.pallas_call(
        functools.partial(_condenser_kernel, emit_reps=emit_reps),
        grid_spec=pl.GridSpec(grid=grid, in_specs=in_specs,
                              out_specs=tuple(out_specs)),
        out_shape=tuple(out_shape),
        compiler_params=pltpu.CompilerParams(
            # no cross-step carry; on v7x a >=2-step "parallel" grid shards
            # across both TensorCores (no effect on 1-TC v5e/v6e).
            dimension_semantics=("parallel",),
            vmem_limit_bytes=vmem_limit),
    )(q0, ql, p0, plast, lbl)

    scores = results[0][:B]
    ce = results[1][:B]
    loss = jnp.mean(ce)                                 # mean reduction in wrapper
    if emit_reps:
        return loss, scores, results[2][:B], results[3][:B * P]
    return loss, scores, None, None


# --------------------------------------------------------------------------
# Tiny deterministic synthetic "encoder" (glue, stands in for PreTrainedModel)
# --------------------------------------------------------------------------
# TODO(synk): the full HF transformer encoders (q_enc/p_enc) are external modules
# and are not re-implemented; a deterministic embedding + tanh(linear) stack
# supplies hidden_states[0] and hidden_states[-1].
def tiny_encoder(token_ids, emb, W, b):
    h0 = emb[token_ids]                      # hidden_states[0]  : (N, L, H)
    hl = jnp.tanh(h0 @ W + b)                # hidden_states[-1] : (N, L, H)
    return h0, hl


# --------------------------------------------------------------------------
# Reference (pure JAX, mirrors the PyTorch forward exactly, on CLS states)
# --------------------------------------------------------------------------
def reference_forward(q0_cls, ql_cls, p0_cls, pl_cls, labels):
    q_reps = (q0_cls + ql_cls) / 2
    p_reps = (p0_cls + pl_cls) / 2
    B = q_reps.shape[0]
    P = p_reps.shape[0] // B
    q_expanded = jnp.repeat(q_reps, P, axis=0)            # q_reps[q_idx_map]
    scores = jnp.sum(q_expanded * p_reps, axis=1).reshape(B, -1)
    lse = jax.nn.logsumexp(scores, axis=-1)
    loss = jnp.mean(lse - scores[jnp.arange(B), labels])
    return loss, scores, q_reps, p_reps


def _check(out, ref, rep_tol=1e-5):
    loss, scores, q_reps, p_reps = out
    loss_r, scores_r, q_reps_r, p_reps_r = ref
    assert jnp.allclose(scores, scores_r, atol=1e-4, rtol=1e-4)
    assert jnp.allclose(loss, loss_r, atol=1e-4, rtol=1e-4)
    if q_reps is not None:
        assert jnp.allclose(q_reps.astype(jnp.float32), q_reps_r, atol=rep_tol, rtol=rep_tol)
        assert jnp.allclose(p_reps.astype(jnp.float32), p_reps_r, atol=rep_tol, rtol=rep_tol)


# --------------------------------------------------------------------------
if __name__ == "__main__":
    key = jax.random.PRNGKey(0)
    k = jax.random.split(key, 20)

    # ---------- Test 1: tiny synthetic-encoder end-to-end (B=2, P=4, H=32) ----------
    B, P, Lq, Lp, H, V = 2, 4, 8, 8, 32, 64

    q_emb = jax.random.normal(k[0], (V, H), jnp.float32) * 0.1
    q_W = jax.random.normal(k[1], (H, H), jnp.float32) * 0.1
    q_b = jax.random.normal(k[2], (H,), jnp.float32) * 0.1
    p_emb = jax.random.normal(k[3], (V, H), jnp.float32) * 0.1
    p_W = jax.random.normal(k[4], (H, H), jnp.float32) * 0.1
    p_b = jax.random.normal(k[5], (H,), jnp.float32) * 0.1

    query_ids = jax.random.randint(k[6], (B, Lq), 0, V)
    passage_ids = jax.random.randint(k[7], (B * P, Lp), 0, V)
    labels = jax.random.randint(k[8], (B,), 0, P).astype(jnp.int32)

    q_h0, q_hl = tiny_encoder(query_ids, q_emb, q_W, q_b)
    p_h0, p_hl = tiny_encoder(passage_ids, p_emb, p_W, p_b)

    out1 = condenser_ltr_head(q_h0[:, 0], q_hl[:, 0], p_h0[:, 0], p_hl[:, 0], labels)
    jax.block_until_ready(out1)
    ref1 = reference_forward(q_h0[:, 0], q_hl[:, 0], p_h0[:, 0], p_hl[:, 0], labels)
    _check(out1, ref1)

    # ---------- Test 2: multi-step parallel grid (B=16, P=4, H=128, TB=8 -> 2 steps) ----------
    B2, P2, H2 = 16, 4, 128
    q0c = jax.random.normal(k[9], (B2, H2), jnp.float32)
    qlc = jax.random.normal(k[10], (B2, H2), jnp.float32)
    p0c = jax.random.normal(k[11], (B2 * P2, H2), jnp.float32)
    plc = jax.random.normal(k[12], (B2 * P2, H2), jnp.float32)
    labels2 = jax.random.randint(k[13], (B2,), 0, P2).astype(jnp.int32)

    out2 = condenser_ltr_head(q0c, qlc, p0c, plc, labels2, block_b=8)
    jax.block_until_ready(out2)
    ref2 = reference_forward(q0c, qlc, p0c, plc, labels2)
    _check(out2, ref2)

    # ---------- Test 3: ragged batch (B=12 padded to 16), auto tile selection ----------
    B3, P3, H3 = 12, 4, 128
    q0d = jax.random.normal(k[14], (B3, H3), jnp.float32)
    qld = jax.random.normal(k[15], (B3, H3), jnp.float32)
    p0d = jax.random.normal(k[16], (B3 * P3, H3), jnp.float32)
    pld = jax.random.normal(k[17], (B3 * P3, H3), jnp.float32)
    labels3 = jax.random.randint(k[18], (B3,), 0, P3).astype(jnp.int32)

    out3 = condenser_ltr_head(q0d, qld, p0d, pld, labels3)
    jax.block_until_ready(out3)
    ref3 = reference_forward(q0d, qld, p0d, pld, labels3)
    _check(out3, ref3)

    # ---------- Test 4: loss+scores only (skip rep writeback: ~33% less HBM traffic) ----------
    out4 = condenser_ltr_head(q0c, qlc, p0c, plc, labels2, block_b=8, emit_reps=False)
    jax.block_until_ready((out4[0], out4[1]))
    _check(out4, ref2)

    # ---------- Test 5: bf16 reps (cuts writeback bytes; reps rounded to bf16) ----------
    out5 = condenser_ltr_head(q0c, qlc, p0c, plc, labels2, block_b=8,
                              rep_dtype=jnp.bfloat16)
    jax.block_until_ready(out5)
    _check(out5, ref2, rep_tol=2e-2)

    print("KERNEL_OK")
</pallas_src>

<mosaic_0001>
module attributes {stable_mosaic.version = 11 : i64} {
  func.func @_condenser_kernel(%arg0: i32, %arg1: memref<2x32xf32, #tpu.memory_space<vmem>>, %arg2: memref<2x32xf32, #tpu.memory_space<vmem>>, %arg3: memref<8x32xf32, #tpu.memory_space<vmem>>, %arg4: memref<8x32xf32, #tpu.memory_space<vmem>>, %arg5: memref<2x1xi32, #tpu.memory_space<vmem>>, %arg6: memref<2x4xf32, #tpu.memory_space<vmem>>, %arg7: memref<2x1xf32, #tpu.memory_space<vmem>>, %arg8: memref<2x32xf32, #tpu.memory_space<vmem>>, %arg9: memref<8x32xf32, #tpu.memory_space<vmem>>) attributes {dimension_semantics = [#tpu.dimension_semantics<parallel>], iteration_bounds = array<i64: 1>, scalar_prefetch = 0 : i64, scratch_operands = 0 : i64, tpu.core_type = #tpu.core_type<tc>, window_params = [{transform_indices = @transform_0, window_bounds = array<i64: 2, 32>}, {transform_indices = @transform_1, window_bounds = array<i64: 2, 32>}, {transform_indices = @transform_2, window_bounds = array<i64: 8, 32>}, {transform_indices = @transform_3, window_bounds = array<i64: 8, 32>}, {transform_indices = @transform_4, window_bounds = array<i64: 2, 1>}, {transform_indices = @transform_5, window_bounds = array<i64: 2, 4>}, {transform_indices = @transform_6, window_bounds = array<i64: 2, 1>}, {transform_indices = @transform_7, window_bounds = array<i64: 2, 32>}, {transform_indices = @transform_8, window_bounds = array<i64: 8, 32>}]} {
    %c0 = arith.constant 0 : index
    %c0_0 = arith.constant 0 : index
    %0 = vector.load %arg1[%c0, %c0_0] : memref<2x32xf32, #tpu.memory_space<vmem>>, vector<2x32xf32>
    %c0_1 = arith.constant 0 : index
    %c0_2 = arith.constant 0 : index
    %1 = vector.load %arg2[%c0_1, %c0_2] : memref<2x32xf32, #tpu.memory_space<vmem>>, vector<2x32xf32>
    %2 = arith.addf %0, %1 : vector<2x32xf32>
    %cst = arith.constant 5.000000e-01 : f32
    %3 = vector.broadcast %cst : f32 to vector<2x32xf32>
    %4 = arith.mulf %2, %3 : vector<2x32xf32>
    %c0_3 = arith.constant 0 : index
    %c0_4 = arith.constant 0 : index
    %5 = vector.load %arg8[%c0_3, %c0_4] : memref<2x32xf32, #tpu.memory_space<vmem>>, vector<2x32xf32>
    tpu.vector_store %arg8[%c0_3, %c0_4], %4 {strides = array<i32>} : memref<2x32xf32, #tpu.memory_space<vmem>>, vector<2x32xf32>,
    %c0_5 = arith.constant 0 : index
    %c0_6 = arith.constant 0 : index
    %6 = vector.load %arg3[%c0_5, %c0_6] : memref<8x32xf32, #tpu.memory_space<vmem>>, vector<8x32xf32>
    %c0_7 = arith.constant 0 : index
    %c0_8 = arith.constant 0 : index
    %7 = vector.load %arg4[%c0_7, %c0_8] : memref<8x32xf32, #tpu.memory_space<vmem>>, vector<8x32xf32>
    %8 = arith.addf %6, %7 : vector<8x32xf32>
    %cst_9 = arith.constant 5.000000e-01 : f32
    %9 = vector.broadcast %cst_9 : f32 to vector<8x32xf32>
    %10 = arith.mulf %8, %9 : vector<8x32xf32>
    %c0_10 = arith.constant 0 : index
    %c0_11 = arith.constant 0 : index
    %11 = vector.load %arg9[%c0_10, %c0_11] : memref<8x32xf32, #tpu.memory_space<vmem>>, vector<8x32xf32>
    tpu.vector_store %arg9[%c0_10, %c0_11], %10 {strides = array<i32>} : memref<8x32xf32, #tpu.memory_space<vmem>>, vector<8x32xf32>,
    %c0_12 = arith.constant 0 : index
    %c0_13 = arith.constant 0 : index
    %12 = tpu.strided_load %arg3[%c0_12, %c0_13] {strides = array<i32: 4, 1>} : memref<8x32xf32, #tpu.memory_space<vmem>>, vector<2x32xf32>
    %c0_14 = arith.constant 0 : index
    %c0_15 = arith.constant 0 : index
    %13 = tpu.strided_load %arg4[%c0_14, %c0_15] {strides = array<i32: 4, 1>} : memref<8x32xf32, #tpu.memory_space<vmem>>, vector<2x32xf32>
    %14 = arith.addf %12, %13 : vector<2x32xf32>
    %cst_16 = arith.constant 5.000000e-01 : f32
    %15 = vector.broadcast %cst_16 : f32 to vector<2x32xf32>
    %16 = arith.mulf %14, %15 : vector<2x32xf32>
    %17 = arith.mulf %4, %16 : vector<2x32xf32>
    %cst_17 = arith.constant dense<0.000000e+00> : vector<2xf32>
    %18 = vector.multi_reduction <add>, %17, %cst_17 [1] : vector<2x32xf32> to vector<2xf32>
    %19 = vector.shape_cast %18 : vector<2xf32> to vector<2x1xf32>
    %c1 = arith.constant 1 : index
    %c0_18 = arith.constant 0 : index
    %20 = tpu.strided_load %arg3[%c1, %c0_18] {strides = array<i32: 4, 1>} : memref<8x32xf32, #tpu.memory_space<vmem>>, vector<2x32xf32>
    %c1_19 = arith.constant 1 : index
    %c0_20 = arith.constant 0 : index
    %21 = tpu.strided_load %arg4[%c1_19, %c0_20] {strides = array<i32: 4, 1>} : memref<8x32xf32, #tpu.memory_space<vmem>>, vector<2x32xf32>
    %22 = arith.addf %20, %21 : vector<2x32xf32>
    %cst_21 = arith.constant 5.000000e-01 : f32
    %23 = vector.broadcast %cst_21 : f32 to vector<2x32xf32>
    %24 = arith.mulf %22, %23 : vector<2x32xf32>
    %25 = arith.mulf %4, %24 : vector<2x32xf32>
    %cst_22 = arith.constant dense<0.000000e+00> : vector<2xf32>
    %26 = vector.multi_reduction <add>, %25, %cst_22 [1] : vector<2x32xf32> to vector<2xf32>
    %27 = vector.shape_cast %26 : vector<2xf32> to vector<2x1xf32>
    %c2 = arith.constant 2 : index
    %c0_23 = arith.constant 0 : index
    %28 = tpu.strided_load %arg3[%c2, %c0_23] {strides = array<i32: 4, 1>} : memref<8x32xf32, #tpu.memory_space<vmem>>, vector<2x32xf32>
    %c2_24 = arith.constant 2 : index
    %c0_25 = arith.constant 0 : index
    %29 = tpu.strided_load %arg4[%c2_24, %c0_25] {strides = array<i32: 4, 1>} : memref<8x32xf32, #tpu.memory_space<vmem>>, vector<2x32xf32>
    %30 = arith.addf %28, %29 : vector<2x32xf32>
    %cst_26 = arith.constant 5.000000e-01 : f32
    %31 = vector.broadcast %cst_26 : f32 to vector<2x32xf32>
    %32 = arith.mulf %30, %31 : vector<2x32xf32>
    %33 = arith.mulf %4, %32 : vector<2x32xf32>
    %cst_27 = arith.constant dense<0.000000e+00> : vector<2xf32>
    %34 = vector.multi_reduction <add>, %33, %cst_27 [1] : vector<2x32xf32> to vector<2xf32>
    %35 = vector.shape_cast %34 : vector<2xf32> to vector<2x1xf32>
    %c3 = arith.constant 3 : index
    %c0_28 = arith.constant 0 : index
    %36 = tpu.strided_load %arg3[%c3, %c0_28] {strides = array<i32: 4, 1>} : memref<8x32xf32, #tpu.memory_space<vmem>>, vector<2x32xf32>
    %c3_29 = arith.constant 3 : index
    %c0_30 = arith.constant 0 : index
    %37 = tpu.strided_load %arg4[%c3_29, %c0_30] {strides = array<i32: 4, 1>} : memref<8x32xf32, #tpu.memory_space<vmem>>, vector<2x32xf32>
    %38 = arith.addf %36, %37 : vector<2x32xf32>
    %cst_31 = arith.constant 5.000000e-01 : f32
    %39 = vector.broadcast %cst_31 : f32 to vector<2x32xf32>
    %40 = arith.mulf %38, %39 : vector<2x32xf32>
    %41 = arith.mulf %4, %40 : vector<2x32xf32>
    %cst_32 = arith.constant dense<0.000000e+00> : vector<2xf32>
    %42 = vector.multi_reduction <add>, %41, %cst_32 [1] : vector<2x32xf32> to vector<2xf32>
    %43 = vector.shape_cast %42 : vector<2xf32> to vector<2x1xf32>
    %44 = tpu.concatenate %19, %27, %35, %43 in 1 : vector<2x1xf32>, vector<2x1xf32>, vector<2x1xf32>, vector<2x1xf32> -> vector<2x4xf32>
    %c0_33 = arith.constant 0 : index
    %c0_34 = arith.constant 0 : index
    %45 = vector.load %arg6[%c0_33, %c0_34] : memref<2x4xf32, #tpu.memory_space<vmem>>, vector<2x4xf32>
    tpu.vector_store %arg6[%c0_33, %c0_34], %44 {strides = array<i32>} : memref<2x4xf32, #tpu.memory_space<vmem>>, vector<2x4xf32>,
    %cst_35 = arith.constant dense<0xFF800000> : vector<2xf32>
    %46 = vector.multi_reduction <maximumf>, %44, %cst_35 [1] : vector<2x4xf32> to vector<2xf32>
    %47 = vector.shape_cast %46 : vector<2xf32> to vector<2x1xf32>
    %48 = vector.broadcast %47 : vector<2x1xf32> to vector<2x4xf32>
    %49 = arith.subf %44, %48 : vector<2x4xf32>
    %50 = math.exp %49 : vector<2x4xf32>
    %cst_36 = arith.constant dense<0.000000e+00> : vector<2xf32>
    %51 = vector.multi_reduction <add>, %50, %cst_36 [1] : vector<2x4xf32> to vector<2xf32>
    %52 = vector.shape_cast %51 : vector<2xf32> to vector<2x1xf32>
    %53 = math.log %52 : vector<2x1xf32>
    %54 = arith.addf %47, %53 : vector<2x1xf32>
    %55 = tpu.iota {dimensions = array<i32: 1>} : vector<2x4xi32>
    %c0_37 = arith.constant 0 : index
    %c0_38 = arith.constant 0 : index
    %56 = vector.load %arg5[%c0_37, %c0_38] : memref<2x1xi32, #tpu.memory_space<vmem>>, vector<2x1xi32>
    %57 = vector.broadcast %56 : vector<2x1xi32> to vector<2x4xi32>
    %58 = arith.cmpi eq, %55, %57 : vector<2x4xi32>
    %cst_39 = arith.constant 0.000000e+00 : f32
    %59 = vector.broadcast %cst_39 : f32 to vector<2x4xf32>
    %60 = arith.select %58, %44, %59 : vector<2x4xi1>, vector<2x4xf32>
    %cst_40 = arith.constant dense<0.000000e+00> : vector<2xf32>
    %61 = vector.multi_reduction <add>, %60, %cst_40 [1] : vector<2x4xf32> to vector<2xf32>
    %62 = vector.shape_cast %61 : vector<2xf32> to vector<2x1xf32>
    %63 = arith.subf %54, %62 : vector<2x1xf32>
    %c0_41 = arith.constant 0 : index
    %c0_42 = arith.constant 0 : index
    %64 = vector.load %arg7[%c0_41, %c0_42] : memref<2x1xf32, #tpu.memory_space<vmem>>, vector<2x1xf32>
    tpu.vector_store %arg7[%c0_41, %c0_42], %63 {strides = array<i32>} : memref<2x1xf32, #tpu.memory_space<vmem>>, vector<2x1xf32>,
    return
  }
  func.func @transform_0(%arg0: i32) -> (i32, i32) {
    %c0_i32 = arith.constant 0 : i32
    %c0_i32_0 = arith.constant 0 : i32
    return %arg0, %c0_i32 : i32, i32
  }
  func.func @transform_1(%arg0: i32) -> (i32, i32) {
    %c0_i32 = arith.constant 0 : i32
    %c0_i32_0 = arith.constant 0 : i32
    return %arg0, %c0_i32 : i32, i32
  }
  func.func @transform_2(%arg0: i32) -> (i32, i32) {
    %c0_i32 = arith.constant 0 : i32
    %c0_i32_0 = arith.constant 0 : i32
    return %arg0, %c0_i32 : i32, i32
  }
  func.func @transform_3(%arg0: i32) -> (i32, i32) {
    %c0_i32 = arith.constant 0 : i32
    %c0_i32_0 = arith.constant 0 : i32
    return %arg0, %c0_i32 : i32, i32
  }
  func.func @transform_4(%arg0: i32) -> (i32, i32) {
    %c0_i32 = arith.constant 0 : i32
    %c0_i32_0 = arith.constant 0 : i32
    return %arg0, %c0_i32 : i32, i32
  }
  func.func @transform_5(%arg0: i32) -> (i32, i32) {
    %c0_i32 = arith.constant 0 : i32
    %c0_i32_0 = arith.constant 0 : i32
    return %arg0, %c0_i32 : i32, i32
  }
  func.func @transform_6(%arg0: i32) -> (i32, i32) {
    %c0_i32 = arith.constant 0 : i32
    %c0_i32_0 = arith.constant 0 : i32
    return %arg0, %c0_i32 : i32, i32
  }
  func.func @transform_7(%arg0: i32) -> (i32, i32) {
    %c0_i32 = arith.constant 0 : i32
    %c0_i32_0 = arith.constant 0 : i32
    return %arg0, %c0_i32 : i32, i32
  }
  func.func @transform_8(%arg0: i32) -> (i32, i32) {
    %c0_i32 = arith.constant 0 : i32
    %c0_i32_0 = arith.constant 0 : i32
    return %arg0, %c0_i32 : i32, i32
  }
}

</mosaic_0001>

<llo_original>
// kernel: tpu_custom_call.1
$region0: #{tpu_custom_call.1}
  #allocation0 [shape = 'u32[]', space=smem, size = 0x4, offset = 0x4, fixed_abs, tag = 'smem constant byte address 0x4 - core index']
  #allocation1 [shape = 'u32[144,128]{1,0:T(1,128)}', space=vmem, size = 0x12000, scoped, tag = 'internal scratch']
  %s0 = inlined_call_operand.vmem [shape: f32[2,32], index: 0, kind: input, shape index: {}]
  %s1 = inlined_call_operand.hbm [shape: f32[2,32], index: 1, kind: input, shape index: {}]
  %s2 = inlined_call_operand.vmem [shape: f32[8,32], index: 2, kind: input, shape index: {}]
  %s3 = inlined_call_operand.hbm [shape: f32[8,32], index: 3, kind: input, shape index: {}]
  %s4 = inlined_call_operand.vmem [shape: s32[2,1], index: 4, kind: input, shape index: {}]
  %s5 = inlined_call_operand.hbm [shape: f32[2,4], index: 5, kind: output, shape index: {0}]
  %s6 = inlined_call_operand.vmem [shape: f32[2,1], index: 6, kind: output, shape index: {1}]
  %s7 = inlined_call_operand.hbm [shape: f32[2,32], index: 7, kind: output, shape index: {2}]
  %s8 = inlined_call_operand.hbm [shape: f32[8,32], index: 8, kind: output, shape index: {3}]
  %9 = xla_tuple %s5, %s6, %s7, %s8
  %s10 = sld [smem:[#allocation0]]
  $region62: #{tpu_custom_call.1} parent=0
    _
  %s12 = ssub.s32 1, %s10
  %s13 = scalar_select 0, %s12, %s10
  $region1: #{tpu_custom_call.1} parent=0
    #allocation2 [shape = 'u8[1024]{0}', space=vmem, size = 0x400, scoped, tag = 'input window, operand 1, single buffered']
    #allocation3 [shape = 's32[1]{0}', space=sflag, size = 0x4, scoped, tag = 'scoped memory for tpu_custom_call.1']
    #allocation4 [shape = 's32[1]{0}', space=sflag, size = 0x4, scoped, tag = 'scoped memory for tpu_custom_call.1']
    #allocation5 [shape = 'u8[4096]{0}', space=vmem, size = 0x1000, scoped, tag = 'input window, operand 3, single buffered']
    #allocation6 [shape = 's32[1]{0}', space=sflag, size = 0x4, scoped, tag = 'scoped memory for tpu_custom_call.1']
    #allocation7 [shape = 'u8[1024]{0}', space=vmem, size = 0x400, scoped, tag = 'output window, operand 0, single buffered']
    #allocation8 [shape = 'u8[1024]{0}', space=vmem, size = 0x400, scoped, tag = 'output window, operand 2, single buffered']
    #allocation9 [shape = 's32[1]{0}', space=sflag, size = 0x4, scoped, tag = 'scoped memory for tpu_custom_call.1']
    #allocation10 [shape = 'u8[4096]{0}', space=vmem, size = 0x1000, scoped, tag = 'output window, operand 3, single buffered']
    %14 = vsyncpa [#allocation3], 0
    %15 = vsyncpa [#allocation6], 0
    %16 = vsyncpa [#allocation4], 0
    %17 = vsyncpa [#allocation9], 0
    // Predicated region
    $region2: #{tpu_custom_call.1} parent=1 // pred_check
      _
    $region3: #{tpu_custom_call.1} parent=1 // pred_check_branch
      %19 = sbr.rel (0) target = $region5
    $region4: #{tpu_custom_call.1} parent=1 // pred_region
      _
    $region5: #{tpu_custom_call.1} parent=1 // pred_fallthru
      _
    // Predicated region
    $region6: #{tpu_custom_call.1} parent=1 // pred_check
      _
    $region7: #{tpu_custom_call.1} parent=1 // pred_check_branch
      %21 = sbr.rel (0) target = $region9
    $region8: #{tpu_custom_call.1} parent=1 // pred_region
      %s23 = ssub.s32 32, 32
      %24 = vsyncadd [#allocation3], %s23
      %s26 = sshll.u32 [#allocation2], 4
      %s27 = int_to_ptr.vmem [resolvable:$true] %s26
      %29 = dma.hbm_to_vmem [thread:$0]  %s1, 32, %s27, [#allocation3]
    $region9: #{tpu_custom_call.1} parent=1 // pred_fallthru
      _
    // Predicated region
    $region10: #{tpu_custom_call.1} parent=1 // pred_check
      _
    $region11: #{tpu_custom_call.1} parent=1 // pred_check_branch
      %31 = sbr.rel (0) target = $region13
    $region12: #{tpu_custom_call.1} parent=1 // pred_region
      _
    $region13: #{tpu_custom_call.1} parent=1 // pred_fallthru
      _
    // Predicated region
    $region14: #{tpu_custom_call.1} parent=1 // pred_check
      _
    $region15: #{tpu_custom_call.1} parent=1 // pred_check_branch
      %33 = sbr.rel (0) target = $region17
    $region16: #{tpu_custom_call.1} parent=1 // pred_region
      %s35 = ssub.s32 128, 128
      %36 = vsyncadd [#allocation6], %s35
      %s38 = sshll.u32 [#allocation5], 4
      %s39 = int_to_ptr.vmem [resolvable:$true] %s38
      %41 = dma.hbm_to_vmem [thread:$0]  %s3, 128, %s39, [#allocation6]
    $region17: #{tpu_custom_call.1} parent=1 // pred_fallthru
      _
    // Predicated region
    $region18: #{tpu_custom_call.1} parent=1 // pred_check
      _
    $region19: #{tpu_custom_call.1} parent=1 // pred_check_branch
      %43 = sbr.rel (0) target = $region21
    $region20: #{tpu_custom_call.1} parent=1 // pred_region
      _
    $region21: #{tpu_custom_call.1} parent=1 // pred_fallthru
      _
    // Predicated region
    $region22: #{tpu_custom_call.1} parent=1 // pred_check
      _
    $region23: #{tpu_custom_call.1} parent=1 // pred_check_branch
      %45 = sbr.rel (0) target = $region25
    $region24: #{tpu_custom_call.1} parent=1 // pred_region
      %46 = dma.done [#allocation3], 32
    $region25: #{tpu_custom_call.1} parent=1 // pred_fallthru
      _
    // Predicated region
    $region26: #{tpu_custom_call.1} parent=1 // pred_check
      _
    $region27: #{tpu_custom_call.1} parent=1 // pred_check_branch
      %48 = sbr.rel (0) target = $region29
    $region28: #{tpu_custom_call.1} parent=1 // pred_region
      %49 = dma.done [#allocation6], 128
    $region29: #{tpu_custom_call.1} parent=1 // pred_fallthru
      _
    %v50 = vld [vmem:[%s0] sm:$0x3]
    %v51 = vld [vmem:[#allocation2] sm:$0x3]
    %v52 = vadd.f32 %v50, %v51
    %v53 = vmul.f32 %v52, 0.5
    %vm54 = vcmask 254976
    %55 = vst.msk [vmem:[#allocation8] sm:$0x3] %vm54, %v53
    %v56 = vld [vmem:[%s2] sm:$0xff]
    %v57 = vld [vmem:[#allocation5] sm:$0xff]
    %v58 = vadd.f32 %v56, %v57
    %v59 = vmul.f32 %v58, 0.5
    %vm60 = vcmask 261120
    %61 = vst.msk [vmem:[#allocation10] sm:$0xff] %vm60, %v59
    %v62 = vld [vmem:[%s2] ss:$4 sm:$0x3]
    %v63 = vld [vmem:[#allocation5] ss:$4 sm:$0x3]
    %v64 = vadd.f32 %v62, %v63
    %v65 = vmul.f32 %v64, 0.5
    %v66 = vmul.f32 %v53, %v65
    %v67 = vsel %vm54, %v66, 0.0
    %68 = vadd.xlane.f32.xlu0 %v67
    %v69 = vpop.xlane.xlu0 %68
    %s70 = scalar_lea.vmem %s2, 1
    %v71 = vld [vmem:[%s70] ss:$4 sm:$0x3]
    %s72 = scalar_lea.vmem [#allocation5], 1
    %v73 = vld [vmem:[%s72] ss:$4 sm:$0x3]
    %v74 = vadd.f32 %v71, %v73
    %v75 = vmul.f32 %v74, 0.5
    %v76 = vmul.f32 %v53, %v75
    %v77 = vsel %vm54, %v76, 0.0
    %78 = vadd.xlane.f32.xlu0 %v77
    %v79 = vpop.xlane.xlu0 %78
    %s80 = scalar_lea.vmem %s2, 2
    %v81 = vld [vmem:[%s80] ss:$4 sm:$0x3]
    %s82 = scalar_lea.vmem [#allocation5], 2
    %v83 = vld [vmem:[%s82] ss:$4 sm:$0x3]
    %v84 = vadd.f32 %v81, %v83
    %v85 = vmul.f32 %v84, 0.5
    %v86 = vmul.f32 %v53, %v85
    %v87 = vsel %vm54, %v86, 0.0
    %88 = vadd.xlane.f32.xlu0 %v87
    %v89 = vpop.xlane.xlu0 %88
    %s90 = scalar_lea.vmem %s2, 3
    %v91 = vld [vmem:[%s90] ss:$4 sm:$0x3]
    %s92 = scalar_lea.vmem [#allocation5], 3
    %v93 = vld [vmem:[%s92] ss:$4 sm:$0x3]
    %v94 = vadd.f32 %v91, %v93
    %v95 = vmul.f32 %v94, 0.5
    %v96 = vmul.f32 %v53, %v95
    %v97 = vsel %vm54, %v96, 0.0
    %98 = vadd.xlane.f32.xlu0 %v97
    %v99 = vpop.xlane.xlu0 %98
    %vm100 = vcmask 7168
    %v101 = vsel %vm100, %v69, %v79
    %vm102 = vcmask 15360
    %v103 = vsel %vm102, %v101, %v89
    %vm104 = vcmask 23552
    %v105 = vsel %vm104, %v103, %v99
    %vm106 = vcmask 25600
    %107 = vst.msk [vmem:[#allocation7] sm:$0x3] %vm106, %v105
    %v108 = vsel %vm106, %v105, -inf
    %109 = vmax.xlane.f32.xlu0 %v108
    %v110 = vpop.xlane.xlu0 %109
    %v111 = vsub.f32 %v105, %v110
    %v112 = vmul.f32 %v111, 1.442695
    %v113 = vpow.pop %v112
    %v114 = vsel %vm106, %v113, 0.0
    %115 = vadd.xlane.f32.xlu0 %v114
    %v116 = vpop.xlane.xlu0 %115
    %v117 = vlog2.pop %v116
    %v118 = vmul.f32 %v117, 0.6931472
    %v119 = vadd.f32 %v110, %v118
    %v120 = vlaneseq
    %v121 = vand.u32 %v120, 127
    %v122 = vld [vmem:[%s4] sm:$0x3]
    %123 = vset.pattern.permute.xlu0 0
    %124 = vperm.xlu0 %123, %v122
    %v125 = vpop.permute.xlu0 %124
    %vm126 = vcmp.eq.s32.totalorder %v121, %v125
    %v127 = vsel %vm126, %v105, 0.0
    %v128 = vsel %vm106, %v127, 0.0
    %129 = vadd.xlane.f32.xlu0 %v128
    %v130 = vpop.xlane.xlu0 %129
    %v131 = vsub.f32 %v119, %v130
    %vm132 = vcmask 1024
    %133 = vst.msk [vmem:[%s6] sm:$0x3] %vm132, %v131
    // Predicated region
    $region30: #{tpu_custom_call.1} parent=1 // pred_check
      _
    $region31: #{tpu_custom_call.1} parent=1 // pred_check_branch
      %135 = sbr.rel (0) target = $region33
    $region32: #{tpu_custom_call.1} parent=1 // pred_region
      %s137 = ssub.s32 32, 32
      %138 = vsyncadd [#allocation4], %s137
      %s140 = sshll.u32 [#allocation7], 4
      %s141 = int_to_ptr.vmem [resolvable:$true] %s140
      %143 = dma.vmem_to_hbm [thread:$0]  %s141, 32, %s5, [#allocation4]
    $region33: #{tpu_custom_call.1} parent=1 // pred_fallthru
      _
    // Predicated region
    $region34: #{tpu_custom_call.1} parent=1 // pred_check
      _
    $region35: #{tpu_custom_call.1} parent=1 // pred_check_branch
      %145 = sbr.rel (0) target = $region37
    $region36: #{tpu_custom_call.1} parent=1 // pred_region
      _
    $region37: #{tpu_custom_call.1} parent=1 // pred_fallthru
      _
    // Predicated region
    $region38: #{tpu_custom_call.1} parent=1 // pred_check
      _
    $region39: #{tpu_custom_call.1} parent=1 // pred_check_branch
      %147 = sbr.rel (0) target = $region41
    $region40: #{tpu_custom_call.1} parent=1 // pred_region
      %s149 = ssub.s32 32, 32
      %150 = vsyncadd [#allocation9], %s149
      %s152 = sshll.u32 [#allocation8], 4
      %s153 = int_to_ptr.vmem [resolvable:$true] %s152
      %155 = dma.vmem_to_hbm [thread:$0]  %s153, 32, %s7, [#allocation9]
    $region41: #{tpu_custom_call.1} parent=1 // pred_fallthru
      _
    // Predicated region
    $region42: #{tpu_custom_call.1} parent=1 // pred_check
      _
    $region43: #{tpu_custom_call.1} parent=1 // pred_check_branch
      %157 = sbr.rel (0) target = $region45
    $region44: #{tpu_custom_call.1} parent=1 // pred_region
      %s159 = ssub.s32 128, 128
      %160 = vsyncadd [#allocation9], %s159
      %s162 = sshll.u32 [#allocation10], 4
      %s163 = int_to_ptr.vmem [resolvable:$true] %s162
      %165 = dma.vmem_to_hbm [thread:$0]  %s163, 128, %s8, [#allocation9]
    $region45: #{tpu_custom_call.1} parent=1 // pred_fallthru
      _
    // Predicated region
    $region46: #{tpu_custom_call.1} parent=1 // pred_check
      _
    $region47: #{tpu_custom_call.1} parent=1 // pred_check_branch
      %167 = sbr.rel (0) target = $region49
    $region48: #{tpu_custom_call.1} parent=1 // pred_region
      %168 = dma.done [#allocation4], 32
    $region49: #{tpu_custom_call.1} parent=1 // pred_fallthru
      _
    // Predicated region
    $region50: #{tpu_custom_call.1} parent=1 // pred_check
      _
    $region51: #{tpu_custom_call.1} parent=1 // pred_check_branch
      %170 = sbr.rel (0) target = $region53
    $region52: #{tpu_custom_call.1} parent=1 // pred_region
      _
    $region53: #{tpu_custom_call.1} parent=1 // pred_fallthru
      _
    // Predicated region
    $region54: #{tpu_custom_call.1} parent=1 // pred_check
      _
    $region55: #{tpu_custom_call.1} parent=1 // pred_check_branch
      %172 = sbr.rel (0) target = $region57
    $region56: #{tpu_custom_call.1} parent=1 // pred_region
      %173 = dma.done [#allocation9], 32
    $region57: #{tpu_custom_call.1} parent=1 // pred_fallthru
      _
    // Predicated region
    $region58: #{tpu_custom_call.1} parent=1 // pred_check
      _
    $region59: #{tpu_custom_call.1} parent=1 // pred_check_branch
      %175 = sbr.rel (0) target = $region61
    $region60: #{tpu_custom_call.1} parent=1 // pred_region
      %176 = dma.done [#allocation9], 128
    $region61: #{tpu_custom_call.1} parent=1 // pred_fallthru
      _
    %177 = vsyncpa [#allocation3], 1
    %178 = vsyncpa [#allocation6], 1
    %179 = vsyncpa [#allocation4], 1
    %180 = vsyncpa [#allocation9], 1

</llo_original>
